<compile_context>
chip_gen: v7x
topology: tpu7x:2x2x1
jax: 0.10.0
libtpu: 0.0.40
codegen_flags: <defaults>
</compile_context>

<pallas_src>
import jax
import jax.numpy as jnp
from jax.experimental import pallas as pl
from jax.experimental.pallas import tpu as pltpu


def _round_up(x, m):
    return ((x + m - 1) // m) * m


def residual_fn_kernel(x_ref, w_ref, b_ref, o_ref):
    """o = fn(x) + x  with  fn(x) = x @ W + b  (fused residual add).

    x_ref: (TM, Df) row tile of (lane-folded) activations
    w_ref: (Df, Df) (block-diagonal) weight, resident across grid steps
    b_ref: (1,  Df) (tiled) bias, broadcast over rows
    """
    x = x_ref[...]
    # MXU matmul with f32 accumulation regardless of I/O dtype.
    y = jnp.dot(x, w_ref[...], preferred_element_type=jnp.float32)
    y = y + b_ref[...].astype(jnp.float32)          # bias broadcast over rows
    # Residual add in f32; single downcast at the store (mem-bound kernel:
    # the compute body sits under huge slack, keep it simple).
    o_ref[...] = (y + x.astype(jnp.float32)).astype(o_ref.dtype)


def _fused_rows(x2, w_big, b_big, G):
    """x2: (Mf, Df) lane-dense rows -> (Mf, Df) = blockdiag-fn(x2) + x2."""
    Mf, Df = x2.shape
    itemsize = jnp.dtype(x2.dtype).itemsize

    # ---- row tiling ----------------------------------------------------------
    # Target ~2 MiB of x-tile per grid step so the ~0.35 us per-step overhead
    # is well amortized (4096 rows f32 / 8192 rows bf16 at Df=128). Keep at
    # least 2 grid steps for problems big enough to matter so v7x can shard
    # the "parallel" M axis across its two TensorCores.
    tm_cap = max(512, min(8192, _round_up((2 << 20) // (Df * itemsize), 256)))
    if Mf <= 1024:
        TM = Mf                                       # tiny problem: one block
    else:
        TM = min(tm_cap, _round_up(pl.cdiv(Mf, 2), 8))
    grid_m = pl.cdiv(Mf, TM)
    # Trailing partial blocks: OOB rows only ever produce masked-off garbage.

    # ---- VMEM budget ---------------------------------------------------------
    # 2 double-buffered x tiles + 2 out tiles + resident weight/bias (default
    # 2 buffers each, negligible at Df<=256). Cap at 48 MiB: safe on v7x's
    # 64 MiB physical VMEM, comfortable on v5e/v6e's 128 MiB.
    vmem_needed = 4 * TM * Df * itemsize + 2 * (Df * Df + Df) * itemsize
    vmem_limit = int(min(48 * 1024 * 1024,
                         max(32 * 1024 * 1024, (vmem_needed * 3) // 2)))

    # Useful flops (the G-fold zero blocks of the block-diagonal weight are
    # not counted, per review nit); bytes use the actual I/O itemsize.
    flops = 2 * Mf * Df * (Df // G)
    bytes_accessed = (2 * Mf * Df + Df * Df + Df) * itemsize

    return pl.pallas_call(
        residual_fn_kernel,
        out_shape=jax.ShapeDtypeStruct((Mf, Df), x2.dtype),
        grid_spec=pltpu.PrefetchScalarGridSpec(
            num_scalar_prefetch=0,
            grid=(grid_m,),
            in_specs=[
                pl.BlockSpec((TM, Df), lambda i: (i, 0)),   # x row tile (pipelined)
                pl.BlockSpec((Df, Df), lambda i: (0, 0)),   # weight, resident
                pl.BlockSpec((1, Df), lambda i: (0, 0)),    # bias, resident
            ],
            out_specs=pl.BlockSpec((TM, Df), lambda i: (i, 0)),
        ),
        compiler_params=pltpu.CompilerParams(
            # Megacore-shard M on v7x; no effect on single-TC v5e/v6e.
            # If an xprof trace ever shows one idle v7x core, switch this
            # axis to pltpu.CORE_PARALLEL.
            dimension_semantics=("parallel",),
            vmem_limit_bytes=vmem_limit,
        ),
        cost_estimate=pl.CostEstimate(
            flops=int(flops), transcendentals=0, bytes_accessed=int(bytes_accessed)
        ),
    )(x2, w_big, b_big)


def make_residual_linear(w, b, *, io_dtype=None):
    """Residual(nn.Linear(D, D)): returns forward(x) = (x @ w + b) + x.

    All parameter prep (lane-fold block-diagonal expansion, feature padding,
    dtype cast) happens ONCE here, keeping the per-forward hot path to exactly
    one pallas_call plus cheap reshapes.
    """
    D = w.shape[0]
    assert w.shape == (D, D) and b.shape == (D,)
    if io_dtype is None:
        io_dtype = w.dtype

    # ---- lane-density plan ---------------------------------------------------
    if D % 128 == 0:
        G, Dp = 1, D                    # already lane-dense
    elif 128 % D == 0:
        G, Dp = 128 // D, D             # fold G rows into one 128-wide row
    else:
        G, Dp = 1, _round_up(D, 128)    # awkward D: pad features to 128-mult

    if Dp != D:                         # feature padding (weights padded once)
        wp = jnp.zeros((Dp, Dp), w.dtype).at[:D, :D].set(w)
        bp = jnp.zeros((Dp,), b.dtype).at[:D].set(b)
    else:
        wp, bp = w, b

    if G > 1:
        # Block-diagonal weight: each D-chunk of a folded row sees the same W.
        w_big = jnp.kron(jnp.eye(G, dtype=wp.dtype), wp)          # (Df, Df)
        b_big = jnp.tile(bp, G)
    else:
        w_big, b_big = wp, bp

    Df = G * Dp
    w_big = w_big.astype(io_dtype)
    b_big = b_big.reshape(1, Df).astype(io_dtype)
    # Unfolded params for the tiny (<G rows) XLA remainder path.
    w_rem = w.astype(io_dtype)
    b_rem = b.astype(io_dtype)

    def forward(x):
        assert x.shape[-1] == D
        lead = x.shape[:-1]
        M = 1
        for s in lead:
            M *= int(s)
        x2 = x.astype(io_dtype).reshape(M, D)
        if Dp != D:
            # Only the awkward-D path pads features (trades one wrapper copy
            # for unmasked lane-dense stores in the kernel).
            x2 = jnp.pad(x2, ((0, 0), (0, Dp - D)))

        Mb = (M // G) * G               # bulk rows handled by the kernel
        rem = M - Mb                    # <= G-1 leftover rows (rare)

        if Mb > 0:
            xb = x2[:Mb].reshape(Mb // G, Df)
            ob = _fused_rows(xb, w_big, b_big, G).reshape(Mb, Dp)
            if Dp != D:
                ob = ob[:, :D]
        else:
            ob = jnp.zeros((0, D), io_dtype)

        if rem:
            # No whole-array jnp.pad: leftover rows go through plain XLA.
            xr = x2[Mb:, :D]
            yr = (jnp.dot(xr.astype(jnp.float32), w_rem.astype(jnp.float32))
                  + b_rem.astype(jnp.float32) + xr.astype(jnp.float32))
            ob = jnp.concatenate([ob, yr.astype(io_dtype)], axis=0)

        return ob.reshape(*lead, D)

    return jax.jit(forward)


if __name__ == "__main__":
    key = jax.random.PRNGKey(0)
    kx, kw, kb = jax.random.split(key, 3)

    B, S, D = 2, 8, 32
    x = jax.random.normal(kx, (B, S, D), dtype=jnp.float32)
    # Deterministic synthetic params for fn = Linear(D, D)
    w = jax.random.normal(kw, (D, D), dtype=jnp.float32) * (1.0 / jnp.sqrt(D))
    b = jax.random.normal(kb, (D,), dtype=jnp.float32) * 0.02

    # Reference (Residual semantics: fn(x) + x).
    ref = (x @ w + b) + x

    # f32 I/O path.
    residual_f32 = make_residual_linear(w, b, io_dtype=jnp.float32)
    out = jax.block_until_ready(residual_f32(x))
    assert out.shape == (B, S, D)
    assert jnp.allclose(out, ref, atol=1e-5, rtol=1e-5), "f32 mismatch vs reference"

    # bf16 I/O path (halves HBM traffic on this mem-bound kernel; f32 MXU
    # accumulation and f32 residual math are kept inside the kernel).
    residual_bf16 = make_residual_linear(w, b, io_dtype=jnp.bfloat16)
    out_bf16 = jax.block_until_ready(residual_bf16(x))
    assert out_bf16.shape == (B, S, D) and out_bf16.dtype == jnp.bfloat16
    assert jnp.allclose(out_bf16.astype(jnp.float32), ref, atol=1e-1, rtol=1e-1), \
        "bf16 mismatch vs reference"

    print("KERNEL_OK")
</pallas_src>

<mosaic_0001>
module attributes {stable_mosaic.version = 11 : i64} {
  func.func @residual_fn_kernel(%arg0: i32, %arg1: memref<4x128xf32, #tpu.memory_space<vmem>>, %arg2: memref<128x128xf32, #tpu.memory_space<vmem>>, %arg3: memref<1x128xf32, #tpu.memory_space<vmem>>, %arg4: memref<4x128xf32, #tpu.memory_space<vmem>>) attributes {dimension_semantics = [#tpu.dimension_semantics<parallel>], iteration_bounds = array<i64: 1>, scalar_prefetch = 0 : i64, scratch_operands = 0 : i64, tpu.core_type = #tpu.core_type<tc>, window_params = [{transform_indices = @transform_0, window_bounds = array<i64: 4, 128>}, {pipeline_mode = #tpu.pipeline_mode<synchronous>, transform_indices = @transform_1, window_bounds = array<i64: 128, 128>}, {pipeline_mode = #tpu.pipeline_mode<synchronous>, transform_indices = @transform_2, window_bounds = array<i64: 1, 128>}, {transform_indices = @transform_3, window_bounds = array<i64: 4, 128>}]} {
    %c0 = arith.constant 0 : index
    %c0_0 = arith.constant 0 : index
    %0 = vector.load %arg1[%c0, %c0_0] : memref<4x128xf32, #tpu.memory_space<vmem>>, vector<4x128xf32>
    %c0_1 = arith.constant 0 : index
    %c0_2 = arith.constant 0 : index
    %1 = vector.load %arg2[%c0_1, %c0_2] : memref<128x128xf32, #tpu.memory_space<vmem>>, vector<128x128xf32>
    %cst = arith.constant dense<0.000000e+00> : vector<4x128xf32>
    %2 = tpu.matmul %0, %1, %cst {dimension_numbers = #tpu.dot_dimension_numbers<[1], [0], [0], [1], [0, 0, 1, 1], [], []>} : vector<4x128xf32>, vector<128x128xf32>, vector<4x128xf32> -> vector<4x128xf32>
    %c0_3 = arith.constant 0 : index
    %c0_4 = arith.constant 0 : index
    %3 = vector.load %arg3[%c0_3, %c0_4] : memref<1x128xf32, #tpu.memory_space<vmem>>, vector<1x128xf32>
    %4 = vector.broadcast %3 : vector<1x128xf32> to vector<4x128xf32>
    %5 = arith.addf %2, %4 : vector<4x128xf32>
    %6 = arith.addf %5, %0 : vector<4x128xf32>
    %c0_5 = arith.constant 0 : index
    %c0_6 = arith.constant 0 : index
    %7 = vector.load %arg4[%c0_5, %c0_6] : memref<4x128xf32, #tpu.memory_space<vmem>>, vector<4x128xf32>
    tpu.vector_store %arg4[%c0_5, %c0_6], %6 {strides = array<i32>} : memref<4x128xf32, #tpu.memory_space<vmem>>, vector<4x128xf32>,
    return
  }
  func.func @transform_0(%arg0: i32) -> (i32, i32) {
    %c0_i32 = arith.constant 0 : i32
    %c0_i32_0 = arith.constant 0 : i32
    return %arg0, %c0_i32 : i32, i32
  }
  func.func @transform_1(%arg0: i32) -> (i32, i32) {
    %c0_i32 = arith.constant 0 : i32
    %c0_i32_0 = arith.constant 0 : i32
    %c0_i32_1 = arith.constant 0 : i32
    return %c0_i32, %c0_i32_0 : i32, i32
  }
  func.func @transform_2(%arg0: i32) -> (i32, i32) {
    %c0_i32 = arith.constant 0 : i32
    %c0_i32_0 = arith.constant 0 : i32
    %c0_i32_1 = arith.constant 0 : i32
    return %c0_i32, %c0_i32_0 : i32, i32
  }
  func.func @transform_3(%arg0: i32) -> (i32, i32) {
    %c0_i32 = arith.constant 0 : i32
    %c0_i32_0 = arith.constant 0 : i32
    return %arg0, %c0_i32 : i32, i32
  }
}

</mosaic_0001>

<llo_original>
// kernel: forward.1
$region0: #{forward.1}
  #allocation0 [shape = 'u32[]', space=smem, size = 0x4, offset = 0x4, fixed_abs, tag = 'smem constant byte address 0x4 - core index']
  #allocation1 [shape = 'u32[144,128]{1,0:T(1,128)}', space=vmem, size = 0x12000, scoped, tag = 'internal scratch']
  %s0 = inlined_call_operand.vmem [shape: f32[4,128], index: 0, kind: input, shape index: {}]
  %s1 = inlined_call_operand.hbm [shape: f32[128,128], index: 1, kind: input, shape index: {}]
  %s2 = inlined_call_operand.vmem [shape: f32[1,128], index: 2, kind: input, shape index: {}]
  %s3 = inlined_call_operand.vmem [shape: f32[4,128], index: 3, kind: output, shape index: {}]
  %s4 = sld [smem:[#allocation0]]
  $region26: #{forward.1} parent=0
    _
  %s6 = ssub.s32 1, %s4
  %s7 = scalar_select 0, %s6, %s4
  $region1: #{forward.1} parent=0
    #allocation2 [shape = 'u8[65536]{0}', space=vmem, size = 0x10000, scoped, tag = 'input window, operand 1, single buffered']
    #allocation3 [shape = 's32[1]{0}', space=sflag, size = 0x4, scoped, tag = 'scoped memory for forward.1']
    %8 = vsyncpa [#allocation3], 0
    // Predicated region
    $region2: #{forward.1} parent=1 // pred_check
      _
    $region3: #{forward.1} parent=1 // pred_check_branch
      %10 = sbr.rel (0) target = $region5
    $region4: #{forward.1} parent=1 // pred_region
      _
    $region5: #{forward.1} parent=1 // pred_fallthru
      _
    // Predicated region
    $region6: #{forward.1} parent=1 // pred_check
      _
    $region7: #{forward.1} parent=1 // pred_check_branch
      %12 = sbr.rel (0) target = $region9
    $region8: #{forward.1} parent=1 // pred_region
      %s14 = ssub.s32 2048, 2048
      %15 = vsyncadd [#allocation3], %s14
      %s16 = sshll.u32 [#allocation2], 4
      %s17 = int_to_ptr.vmem [resolvable:$true] %s16
      %22 = dma.hbm_to_vmem [thread:$0]  %s1, 2048, %s17, [#allocation3], 128, 128, 8
    $region9: #{forward.1} parent=1 // pred_fallthru
      _
    // Predicated region
    $region10: #{forward.1} parent=1 // pred_check
      _
    $region11: #{forward.1} parent=1 // pred_check_branch
      %24 = sbr.rel (0) target = $region13
    $region12: #{forward.1} parent=1 // pred_region
      _
    $region13: #{forward.1} parent=1 // pred_fallthru
      _
    // Predicated region
    $region14: #{forward.1} parent=1 // pred_check
      _
    $region15: #{forward.1} parent=1 // pred_check_branch
      %26 = sbr.rel (0) target = $region17
    $region16: #{forward.1} parent=1 // pred_region
      %27 = dma.done [#allocation3], 2048
    $region17: #{forward.1} parent=1 // pred_fallthru
      _
    %v28 = vld [vmem:[%s0] sm:$0xf]
    %v29 = vld [vmem:[#allocation2] sm:$0xff]
    %v30 = vld [vmem:[#allocation2 + $0x8] sm:$0xff]
    %v31 = vld [vmem:[#allocation2 + $0x10] sm:$0xff]
    %v32 = vld [vmem:[#allocation2 + $0x18] sm:$0xff]
    %v33 = vld [vmem:[#allocation2 + $0x20] sm:$0xff]
    %v34 = vld [vmem:[#allocation2 + $0x28] sm:$0xff]
    %v35 = vld [vmem:[#allocation2 + $0x30] sm:$0xff]
    %v36 = vld [vmem:[#allocation2 + $0x38] sm:$0xff]
    %v37 = vld [vmem:[#allocation2 + $0x40] sm:$0xff]
    %v38 = vld [vmem:[#allocation2 + $0x48] sm:$0xff]
    %v39 = vld [vmem:[#allocation2 + $0x50] sm:$0xff]
    %v40 = vld [vmem:[#allocation2 + $0x58] sm:$0xff]
    %v41 = vld [vmem:[#allocation2 + $0x60] sm:$0xff]
    %v42 = vld [vmem:[#allocation2 + $0x68] sm:$0xff]
    %v43 = vld [vmem:[#allocation2 + $0x70] sm:$0xff]
    %v44 = vld [vmem:[#allocation2 + $0x78] sm:$0xff]
    %v45 = vld [vmem:[%s2] sm:$0x1]
    %v47 = vlaneseq
    %v48 = vshrl.u32 %v47, 7
    %v49 = vsub.s32 0, %v48
    %v50 = vrot.slane %v45, %v49
    %52 = vmatprep.subr.mxu0 0.0
    %53 = vmatpush1.msra.mxu0 %v29
    %54 = vmatprep.subr.mxu0 0.0
    %55 = vmatpush1.msra.mxu0 %v30
    %56 = vmatprep.subr.mxu0 0.0
    %57 = vmatpush1.msra.mxu0 %v31
    %58 = vmatprep.subr.mxu0 0.0
    %59 = vmatpush1.msra.mxu0 %v32
    %60 = vmatprep.subr.mxu0 0.0
    %61 = vmatpush1.msra.mxu0 %v33
    %62 = vmatprep.subr.mxu0 0.0
    %63 = vmatpush1.msra.mxu0 %v34
    %64 = vmatprep.subr.mxu0 0.0
    %65 = vmatpush1.msra.mxu0 %v35
    %66 = vmatprep.subr.mxu0 0.0
    %67 = vmatpush1.msra.mxu0 %v36
    %68 = vmatprep.subr.mxu0 0.0
    %69 = vmatpush1.msra.mxu0 %v37
    %70 = vmatprep.subr.mxu0 0.0
    %71 = vmatpush1.msra.mxu0 %v38
    %72 = vmatprep.subr.mxu0 0.0
    %73 = vmatpush1.msra.mxu0 %v39
    %74 = vmatprep.subr.mxu0 0.0
    %75 = vmatpush1.msra.mxu0 %v40
    %76 = vmatprep.subr.mxu0 0.0
    %77 = vmatpush1.msra.mxu0 %v41
    %78 = vmatprep.subr.mxu0 0.0
    %79 = vmatpush1.msra.mxu0 %v42
    %80 = vmatprep.subr.mxu0 0.0
    %81 = vmatpush1.msra.mxu0 %v43
    %82 = vmatprep.subr.mxu0 0.0
    %83 = vmatpush1.msra.mxu0 %v44
    %84 = vmatprep.subr.mxu0 0.0
    %85 = vmatpush1.msra.mxu0 0.0
    %86 = vmatprep.subr.mxu0 0.0
    %87 = vmatpush1.msra.mxu0 0.0
    %88 = vmatprep.subr.mxu0 0.0
    %89 = vmatpush1.msra.mxu0 0.0
    %90 = vmatprep.subr.mxu0 0.0
    %91 = vmatpush1.msra.mxu0 0.0
    %92 = vmatprep.subr.mxu0 0.0
    %93 = vmatpush1.msra.mxu0 0.0
    %94 = vmatprep.subr.mxu0 0.0
    %95 = vmatpush1.msra.mxu0 0.0
    %96 = vmatprep.subr.mxu0 0.0
    %97 = vmatpush1.msra.mxu0 0.0
    %98 = vmatprep.subr.mxu0 0.0
    %99 = vmatpush1.msra.mxu0 0.0
    %100 = vmatprep.subr.mxu0 0.0
    %101 = vmatpush1.msra.mxu0 0.0
    %102 = vmatprep.subr.mxu0 0.0
    %103 = vmatpush1.msra.mxu0 0.0
    %104 = vmatprep.subr.mxu0 0.0
    %105 = vmatpush1.msra.mxu0 0.0
    %106 = vmatprep.subr.mxu0 0.0
    %107 = vmatpush1.msra.mxu0 0.0
    %108 = vmatprep.subr.mxu0 0.0
    %109 = vmatpush1.msra.mxu0 0.0
    %110 = vmatprep.subr.mxu0 0.0
    %111 = vmatpush1.msra.mxu0 0.0
    %112 = vmatprep.subr.mxu0 0.0
    %113 = vmatpush1.msra.mxu0 0.0
    %114 = vmatprep.subr.mxu0 0.0
    %115 = vmatpush1.msra.mxu0 0.0
    %116 = vmatprep.mubr.f32.mxu0 0.0
    %117 = vmatmul.mubr.f32.gmra.mrb[0].mxu0 %v28
    %v118 = vpop.f32.mrb[0].mxu0
    %v119 = vadd.f32 %v50, %v118
    %v120 = vpop.f32.mrb[0].mxu0
    %121 = vdwg.mxu0
    %v122 = vadd.f32 %v119, %v28
    %123 = vst [vmem:[%s3] sm:$0xf] %v122
    // Predicated region
    $region18: #{forward.1} parent=1 // pred_check
      _
    $region19: #{forward.1} parent=1 // pred_check_branch
      %125 = sbr.rel (0) target = $region21
    $region20: #{forward.1} parent=1 // pred_region
      _
    $region21: #{forward.1} parent=1 // pred_fallthru
      _
    // Predicated region
    $region22: #{forward.1} parent=1 // pred_check
      _
    $region23: #{forward.1} parent=1 // pred_check_branch
      %127 = sbr.rel (0) target = $region25
    $region24: #{forward.1} parent=1 // pred_region
      _
    $region25: #{forward.1} parent=1 // pred_fallthru
      _
    %128 = vsyncpa [#allocation3], 1

</llo_original>
